<compile_context>
chip_gen: v5e
topology: v5e:2x2
jax: 0.10.0
libtpu: 0.0.40
codegen_flags: <defaults>
</compile_context>

<pallas_src>
import functools

import jax
import jax.numpy as jnp
from jax.experimental import pallas as pl
from jax.experimental.pallas import tpu as pltpu

# Finite "-inf": keeps exp(m_old - m_new) well-defined even for tiles that are
# entirely padding (can happen after rounding the tile count up to num_splits).
_NEG_INIT = -1e30


def _round_up(x, m):
    return ((x + m - 1) // m) * m


def _vmem_capacity_bytes():
    try:
        return int(pltpu.get_tpu_info().vmem_capacity_bytes)
    except Exception:
        return 64 * 1024 * 1024  # conservative fallback: v7x per-TensorCore VMEM


def _estimate_vmem_bytes(tile_n, d_p, h_p, in_itemsize):
    """Rough per-step VMEM footprint used to size tile_n (conservative)."""
    two_h = 2 * h_p
    x_bytes = 2 * tile_n * d_p * in_itemsize                 # double-buffered x tile
    w_bytes = 2 * (d_p * two_h * in_itemsize + two_h * 4 + h_p * 4)  # resident weights
    uv_bytes = tile_n * two_h * 4                            # f32 pre-activations
    gate_bytes = 3 * tile_n * h_p * 4                        # u, v, h (worst case)
    xf_bytes = tile_n * d_p * 4                              # f32 copy of x for acc
    acc_bytes = d_p * 4 + 1024
    return x_bytes + w_bytes + uv_bytes + gate_bytes + xf_bytes + acc_bytes


def _attn_mil_kernel(n_ref, x_ref, wuv_ref, buv_ref, ww_ref,
                     m_out, l_out, acc_out,
                     m_sc, l_sc, acc_sc,
                     *, tile_n, hidden_p, tiles_per_split):
    """One grid step = one (TN, Dp) tile of patches; online-softmax reduction.

    n_ref  : (1,) int32 SMEM  runtime bag size (scalar prefetch, no recompiles)
    x_ref  : (TN, Dp)         patch-embedding tile (matmul dtype, e.g. bf16)
    wuv_ref: (Dp, 2*Hp)       fused [Wu | Wv] (pre-transposed, padded)
    buv_ref: (1, 2*Hp)        fused [bu | bv] (f32)
    ww_ref : (1, Hp)          w_layer weight as a row (f32); bw dropped (cancels)
    m/l/acc_out : per-split partials, merged in a JAX epilogue
    m/l/acc_sc  : VMEM scratch -- running max (1,1), denom (1,1), sum (1,Dp)
    """
    c = pl.program_id(0)          # reduction split (parallel across TCs on v7x)
    i = pl.program_id(1)          # patch tile within the split
    n_rows = n_ref[0]

    @pl.when(i == 0)
    def _init():
        m_sc[...] = jnp.full_like(m_sc, _NEG_INIT)
        l_sc[...] = jnp.zeros_like(l_sc)
        acc_sc[...] = jnp.zeros_like(acc_sc)

    x = x_ref[...]                                                # (TN, Dp)

    # Fused u/v pre-activations on the MXU, f32 accumulation.
    uv = jnp.dot(x, wuv_ref[...], preferred_element_type=jnp.float32)
    uv = uv + buv_ref[...]                                        # (TN, 2Hp) f32
    u = jnp.tanh(uv[:, :hidden_p])
    v = jax.nn.sigmoid(uv[:, hidden_p:])
    h = u * v                                                     # (TN, Hp) f32
    # dropout: identity in eval mode.

    # Per-patch score: VPU multiply + lane reduce (no degenerate H x 1 matmul).
    s = jnp.sum(h * ww_ref[...], axis=-1, keepdims=True)          # (TN, 1)

    # Mask padded rows (row >= n_rows).  Padded x rows are zeros, so no NaNs.
    row = (jax.lax.broadcasted_iota(jnp.int32, (tile_n, 1), 0)
           + (c * tiles_per_split + i) * tile_n)
    valid = row < n_rows
    s = jnp.where(valid, s, _NEG_INIT)

    # Online-softmax update.
    m_old = m_sc[...]                                             # (1, 1)
    m_new = jnp.maximum(m_old, jnp.max(s))                        # (1, 1)
    corr = jnp.exp(m_old - m_new)                                 # (1, 1)
    e = jnp.where(valid, jnp.exp(s - m_new), 0.0)                 # (TN, 1)

    l_sc[...] = corr * l_sc[...] + jnp.sum(e)
    # Weighted partial sum: broadcast multiply + sublane reduce (no transpose).
    xf = x.astype(jnp.float32)
    acc_sc[...] = corr * acc_sc[...] + jnp.sum(xf * e, axis=0, keepdims=True)
    m_sc[...] = m_new

    @pl.when(i == pl.num_programs(1) - 1)
    def _finalize():
        # Lane-broadcast the scalars so the stores stay lane-dense.
        m_out[...] = jnp.broadcast_to(m_sc[...], (1, 128)).reshape(1, 1, 128)
        l_out[...] = jnp.broadcast_to(l_sc[...], (1, 128)).reshape(1, 1, 128)
        acc_out[...] = acc_sc[...].reshape(1, 1, -1)


def attention_mil_aggregate(patch_embs, wu, bu, wv, bv, ww, bw=None, *,
                            tile_n=None, num_splits=None,
                            matmul_dtype=jnp.bfloat16):
    """Gated-attention MIL aggregation (eval mode).

    patch_embs: (N, D) patch embeddings.
    wu, wv    : (D, H) linear weights (pre-transposed vs. torch).
    bu, bv    : (1, H) or (H,) biases.
    ww        : (H, 1) or (H,) score weight.
    bw        : ignored -- a uniform score shift cancels in the softmax.

    Returns (1, D) aggregated embedding in patch_embs.dtype.
    Note: N == 0 (empty bag) is not supported (division by zero), same as torch.
    """
    N, D = patch_embs.shape
    H = wu.shape[1]
    f32 = jnp.float32
    out_dtype = patch_embs.dtype
    in_itemsize = jnp.dtype(matmul_dtype).itemsize

    # Lane-dense padding (no-ops when D/H are already multiples of 128).
    Dp = _round_up(D, 128)
    Hp = _round_up(H, 128)

    # Per-generation VMEM budget: ~96 MiB on v5e/v6e (128 MiB), ~48 MiB on v7x (64 MiB).
    vmem_cap = _vmem_capacity_bytes()
    vmem_limit = min(int(vmem_cap * 0.75), 112 * 1024 * 1024)

    # Patch-axis tile: target ~4 MiB streamed blocks (>=1 MiB blocks reach ~85%
    # of HBM roofline), shrunk until the estimated per-step footprint fits the
    # budget; multiple of 16 for clean bf16 sublane packing.
    if tile_n is None:
        target_block_bytes = 4 * 1024 * 1024
        cand = max(16, _round_up(target_block_bytes // (Dp * in_itemsize), 16))
        budget = int(vmem_limit * 0.8)
        while cand > 16 and _estimate_vmem_bytes(cand, Dp, Hp, in_itemsize) > budget:
            cand = max(16, _round_up(cand // 2, 16))
        tile_n = cand
    tile_n = max(16, _round_up(min(tile_n, max(N, 1)), 16))

    # Split the reduction across (up to) 2 TensorCores for v7x; harmless on
    # 1-TC chips (just two serial accumulator passes + a tiny merge).
    n_tiles = pl.cdiv(max(N, 1), tile_n)
    if num_splits is None:
        num_splits = 2 if n_tiles >= 2 else 1
    num_splits = max(1, min(num_splits, n_tiles))
    n_tiles = _round_up(n_tiles, num_splits)
    tiles_per_split = n_tiles // num_splits
    Np = n_tiles * tile_n

    # Single fused pad+cast of the bag (no f32 staging pass).  Zero-padded
    # rows/lanes are harmless: their scores are masked (e=0) and zero features
    # contribute nothing to the weighted sum.
    x_p = jnp.pad(patch_embs.astype(matmul_dtype), ((0, Np - N), (0, Dp - D)))

    # Parameters are tiny; pad/pack once outside the kernel.
    wu_p = jnp.pad(wu.astype(f32), ((0, Dp - D), (0, Hp - H)))
    wv_p = jnp.pad(wv.astype(f32), ((0, Dp - D), (0, Hp - H)))
    w_uv = jnp.concatenate([wu_p, wv_p], axis=1).astype(matmul_dtype)   # (Dp, 2Hp)

    bu_p = jnp.pad(jnp.reshape(bu, (1, H)).astype(f32), ((0, 0), (0, Hp - H)))
    bv_p = jnp.pad(jnp.reshape(bv, (1, H)).astype(f32), ((0, 0), (0, Hp - H)))
    b_uv = jnp.concatenate([bu_p, bv_p], axis=1)                        # (1, 2Hp)

    ww_p = jnp.pad(jnp.reshape(ww, (1, H)).astype(f32), ((0, 0), (0, Hp - H)))
    # bw intentionally not passed to the kernel (softmax shift invariance).

    n_rows = jnp.asarray([N], dtype=jnp.int32)   # runtime bag size via SMEM prefetch

    kernel = functools.partial(_attn_mil_kernel, tile_n=tile_n, hidden_p=Hp,
                               tiles_per_split=tiles_per_split)

    m_p, l_p, acc_p = pl.pallas_call(
        kernel,
        out_shape=(
            jax.ShapeDtypeStruct((num_splits, 1, 128), f32),   # per-split max
            jax.ShapeDtypeStruct((num_splits, 1, 128), f32),   # per-split denom
            jax.ShapeDtypeStruct((num_splits, 1, Dp), f32),    # per-split weighted sum
        ),
        grid_spec=pltpu.PrefetchScalarGridSpec(
            num_scalar_prefetch=1,
            grid=(num_splits, tiles_per_split),
            in_specs=[
                pl.BlockSpec((tile_n, Dp),
                             lambda c, i, n: (c * tiles_per_split + i, 0)),  # stream x
                pl.BlockSpec((Dp, 2 * Hp), lambda c, i, n: (0, 0)),          # weights resident
                pl.BlockSpec((1, 2 * Hp), lambda c, i, n: (0, 0)),
                pl.BlockSpec((1, Hp), lambda c, i, n: (0, 0)),
            ],
            out_specs=[
                pl.BlockSpec((1, 1, 128), lambda c, i, n: (c, 0, 0)),
                pl.BlockSpec((1, 1, 128), lambda c, i, n: (c, 0, 0)),
                pl.BlockSpec((1, 1, Dp), lambda c, i, n: (c, 0, 0)),
            ],
            scratch_shapes=[
                pltpu.VMEM((1, 1), f32),    # running max m
                pltpu.VMEM((1, 1), f32),    # running denom l
                pltpu.VMEM((1, Dp), f32),   # running weighted sum acc
            ],
        ),
        compiler_params=pltpu.CompilerParams(
            dimension_semantics=("parallel", "arbitrary"),
            vmem_limit_bytes=vmem_limit,
        ),
    )(n_rows, x_p, w_uv, b_uv, ww_p)

    # Tiny JAX epilogue: logsumexp-style merge of the per-split partials + divide.
    m_i = m_p[:, 0, 0]                                   # (S,)
    l_i = l_p[:, 0, 0]                                   # (S,)
    acc_i = acc_p[:, 0, :]                               # (S, Dp)
    m_glob = jnp.max(m_i)
    scale = jnp.exp(m_i - m_glob)                        # empty split -> 0
    denom = jnp.sum(scale * l_i)
    num = jnp.sum(scale[:, None] * acc_i, axis=0)        # (Dp,)
    out = (num / denom)[None, :D]
    return out.astype(out_dtype)


def _reference(patch_embs, wu, bu, wv, bv, ww, bw):
    """Pure-JAX reference matching the PyTorch forward (eval mode), f32."""
    u = jnp.tanh(patch_embs @ wu + bu)
    v = jax.nn.sigmoid(patch_embs @ wv + bv)
    h = u * v
    scores = (h @ ww + bw).squeeze(-1)
    alpha = jax.nn.softmax(scores, axis=0)
    return jnp.sum(patch_embs * alpha[:, None], axis=0, keepdims=True)


if __name__ == "__main__":
    # Small shapes consistent with the module (N patches x in_dim features);
    # deliberately non-multiples of 8/128 and tile_n < N to exercise padding,
    # row masking, the multi-tile online softmax and the 2-split merge
    # (including a fully padded trailing tile in split 1).
    N, IN_DIM, HIDDEN = 40, 48, 24

    key = jax.random.PRNGKey(0)
    k_x, k_wu, k_bu, k_wv, k_bv, k_ww, k_bw = jax.random.split(key, 7)

    x  = jax.random.normal(k_x,  (N, IN_DIM),      dtype=jnp.float32)
    wu = jax.random.normal(k_wu, (IN_DIM, HIDDEN), dtype=jnp.float32) * 0.1
    bu = jax.random.normal(k_bu, (1, HIDDEN),      dtype=jnp.float32) * 0.1
    wv = jax.random.normal(k_wv, (IN_DIM, HIDDEN), dtype=jnp.float32) * 0.1
    bv = jax.random.normal(k_bv, (1, HIDDEN),      dtype=jnp.float32) * 0.1
    ww = jax.random.normal(k_ww, (HIDDEN, 1),      dtype=jnp.float32) * 0.1
    bw = jax.random.normal(k_bw, (1, 1),           dtype=jnp.float32) * 0.1

    ref = _reference(x, wu, bu, wv, bv, ww, bw)

    # Exact-path check (f32 matmuls), forced multi-tile + 2-split reduction.
    out_f32 = attention_mil_aggregate(x, wu, bu, wv, bv, ww, bw,
                                      tile_n=16, num_splits=2,
                                      matmul_dtype=jnp.float32)
    out_f32 = jax.block_until_ready(out_f32)
    assert out_f32.shape == (1, IN_DIM), out_f32.shape
    assert jnp.allclose(out_f32, ref, atol=1e-4, rtol=1e-4), (out_f32, ref)

    # Production path (bf16 matmuls, f32 softmax/accumulation), same tiling.
    out_bf16 = attention_mil_aggregate(x, wu, bu, wv, bv, ww, bw,
                                       tile_n=16, num_splits=2,
                                       matmul_dtype=jnp.bfloat16)
    out_bf16 = jax.block_until_ready(out_bf16)
    assert out_bf16.shape == (1, IN_DIM), out_bf16.shape
    assert jnp.allclose(out_bf16, ref, atol=1e-2, rtol=1e-2), (out_bf16, ref)

    # Default auto-tuned path (VMEM-budgeted tile_n, auto split count).
    out_auto = attention_mil_aggregate(x, wu, bu, wv, bv, ww, bw)
    out_auto = jax.block_until_ready(out_auto)
    assert out_auto.shape == (1, IN_DIM), out_auto.shape
    assert jnp.allclose(out_auto, ref, atol=1e-2, rtol=1e-2), (out_auto, ref)

    print("KERNEL_OK")
</pallas_src>

<mosaic_0001>
module attributes {stable_mosaic.version = 11 : i64} {
  func.func @_attn_mil_kernel(%arg0: i32, %arg1: i32, %arg2: memref<1xi32, #tpu.memory_space<smem>>, %arg3: memref<16x128xf32, #tpu.memory_space<vmem>>, %arg4: memref<128x256xf32, #tpu.memory_space<vmem>>, %arg5: memref<1x256xf32, #tpu.memory_space<vmem>>, %arg6: memref<1x128xf32, #tpu.memory_space<vmem>>, %arg7: memref<1x1x128xf32, #tpu.memory_space<vmem>>, %arg8: memref<1x1x128xf32, #tpu.memory_space<vmem>>, %arg9: memref<1x1x128xf32, #tpu.memory_space<vmem>>, %arg10: memref<1x1xf32, #tpu.memory_space<vmem>>, %arg11: memref<1x1xf32, #tpu.memory_space<vmem>>, %arg12: memref<1x128xf32, #tpu.memory_space<vmem>>) attributes {dimension_semantics = [#tpu.dimension_semantics<parallel>, #tpu.dimension_semantics<arbitrary>], iteration_bounds = array<i64: 2, 2>, scalar_prefetch = 1 : i64, scratch_operands = 3 : i64, tpu.core_type = #tpu.core_type<tc>, window_params = [{transform_indices = @transform_0, window_bounds = array<i64: 16, 128>}, {pipeline_mode = #tpu.pipeline_mode<synchronous>, transform_indices = @transform_1, window_bounds = array<i64: 128, 256>}, {pipeline_mode = #tpu.pipeline_mode<synchronous>, transform_indices = @transform_2, window_bounds = array<i64: 1, 256>}, {pipeline_mode = #tpu.pipeline_mode<synchronous>, transform_indices = @transform_3, window_bounds = array<i64: 1, 128>}, {transform_indices = @transform_4, window_bounds = array<i64: 1, 1, 128>}, {transform_indices = @transform_5, window_bounds = array<i64: 1, 1, 128>}, {transform_indices = @transform_6, window_bounds = array<i64: 1, 1, 128>}]} {
    %c0 = arith.constant 0 : index
    %0 = memref.load %arg2[%c0] : memref<1xi32, #tpu.memory_space<smem>>
    %c0_i32 = arith.constant 0 : i32
    %1 = arith.cmpi eq, %arg1, %c0_i32 : i32
    %2 = arith.extui %1 : i1 to i32
    %c0_i32_0 = arith.constant 0 : i32
    %3 = arith.cmpi ne, %2, %c0_i32_0 : i32
    scf.if %3 {
      %cst_29 = arith.constant -1.000000e+30 : f32
      %70 = vector.broadcast %cst_29 : f32 to vector<1x1xf32>
      %c0_30 = arith.constant 0 : index
      %c0_31 = arith.constant 0 : index
      %71 = vector.load %arg10[%c0_30, %c0_31] : memref<1x1xf32, #tpu.memory_space<vmem>>, vector<1x1xf32>
      tpu.vector_store %arg10[%c0_30, %c0_31], %70 {strides = array<i32>} : memref<1x1xf32, #tpu.memory_space<vmem>>, vector<1x1xf32>,
      %cst_32 = arith.constant 0.000000e+00 : f32
      %72 = vector.broadcast %cst_32 : f32 to vector<1x1xf32>
      %c0_33 = arith.constant 0 : index
      %c0_34 = arith.constant 0 : index
      %73 = vector.load %arg11[%c0_33, %c0_34] : memref<1x1xf32, #tpu.memory_space<vmem>>, vector<1x1xf32>
      tpu.vector_store %arg11[%c0_33, %c0_34], %72 {strides = array<i32>} : memref<1x1xf32, #tpu.memory_space<vmem>>, vector<1x1xf32>,
      %cst_35 = arith.constant 0.000000e+00 : f32
      %74 = vector.broadcast %cst_35 : f32 to vector<1x128xf32>
      %c0_36 = arith.constant 0 : index
      %c0_37 = arith.constant 0 : index
      %75 = vector.load %arg12[%c0_36, %c0_37] : memref<1x128xf32, #tpu.memory_space<vmem>>, vector<1x128xf32>
      tpu.vector_store %arg12[%c0_36, %c0_37], %74 {strides = array<i32>} : memref<1x128xf32, #tpu.memory_space<vmem>>, vector<1x128xf32>,
    } else {
    }
    %c0_1 = arith.constant 0 : index
    %c0_2 = arith.constant 0 : index
    %4 = vector.load %arg3[%c0_1, %c0_2] : memref<16x128xf32, #tpu.memory_space<vmem>>, vector<16x128xf32>
    %c0_3 = arith.constant 0 : index
    %c0_4 = arith.constant 0 : index
    %5 = vector.load %arg4[%c0_3, %c0_4] : memref<128x256xf32, #tpu.memory_space<vmem>>, vector<128x256xf32>
    %cst = arith.constant dense<0.000000e+00> : vector<16x256xf32>
    %6 = tpu.matmul %4, %5, %cst {dimension_numbers = #tpu.dot_dimension_numbers<[1], [0], [0], [1], [0, 0, 1, 1], [], []>} : vector<16x128xf32>, vector<128x256xf32>, vector<16x256xf32> -> vector<16x256xf32>
    %c0_5 = arith.constant 0 : index
    %c0_6 = arith.constant 0 : index
    %7 = vector.load %arg5[%c0_5, %c0_6] : memref<1x256xf32, #tpu.memory_space<vmem>>, vector<1x256xf32>
    %8 = vector.broadcast %7 : vector<1x256xf32> to vector<16x256xf32>
    %9 = arith.addf %6, %8 : vector<16x256xf32>
    %10 = vector.extract_strided_slice %9 {offsets = [0, 0], sizes = [16, 128], strides = [1, 1]} : vector<16x256xf32> to vector<16x128xf32>
    %11 = math.tanh %10 : vector<16x128xf32>
    %12 = vector.extract_strided_slice %9 {offsets = [0, 128], sizes = [16, 128], strides = [1, 1]} : vector<16x256xf32> to vector<16x128xf32>
    %13 = arith.negf %12 : vector<16x128xf32>
    %14 = math.exp %13 : vector<16x128xf32>
    %cst_7 = arith.constant 1.000000e+00 : f32
    %15 = vector.broadcast %cst_7 : f32 to vector<16x128xf32>
    %16 = arith.addf %15, %14 : vector<16x128xf32>
    %17 = arith.divf %15, %16 : vector<16x128xf32>
    %18 = arith.mulf %11, %17 : vector<16x128xf32>
    %c0_8 = arith.constant 0 : index
    %c0_9 = arith.constant 0 : index
    %19 = vector.load %arg6[%c0_8, %c0_9] : memref<1x128xf32, #tpu.memory_space<vmem>>, vector<1x128xf32>
    %20 = vector.broadcast %19 : vector<1x128xf32> to vector<16x128xf32>
    %21 = arith.mulf %18, %20 : vector<16x128xf32>
    %cst_10 = arith.constant dense<0.000000e+00> : vector<16xf32>
    %22 = vector.multi_reduction <add>, %21, %cst_10 [1] : vector<16x128xf32> to vector<16xf32>
    %23 = vector.shape_cast %22 : vector<16xf32> to vector<16x1xf32>
    %24 = tpu.iota {dimensions = array<i32: 0>} : vector<16x1xi32>
    %c2_i32 = arith.constant 2 : i32
    %25 = arith.muli %arg0, %c2_i32 : i32
    %26 = arith.addi %25, %arg1 : i32
    %c16_i32 = arith.constant 16 : i32
    %27 = arith.muli %26, %c16_i32 : i32
    %28 = vector.broadcast %27 : i32 to vector<16x1xi32>
    %29 = arith.addi %24, %28 : vector<16x1xi32>
    %30 = vector.broadcast %0 : i32 to vector<16x1xi32>
    %31 = arith.cmpi slt, %29, %30 : vector<16x1xi32>
    %cst_11 = arith.constant -1.000000e+30 : f32
    %32 = vector.broadcast %cst_11 : f32 to vector<16x1xf32>
    %33 = arith.select %31, %23, %32 : vector<16x1xi1>, vector<16x1xf32>
    %c0_12 = arith.constant 0 : index
    %c0_13 = arith.constant 0 : index
    %34 = vector.load %arg10[%c0_12, %c0_13] : memref<1x1xf32, #tpu.memory_space<vmem>>, vector<1x1xf32>
    %35 = vector.shape_cast %33 : vector<16x1xf32> to vector<1x16x1xf32>
    %cst_14 = arith.constant dense<0xFF800000> : vector<1xf32>
    %36 = vector.multi_reduction <maximumf>, %35, %cst_14 [1, 2] : vector<1x16x1xf32> to vector<1xf32>
    %37 = vector.shape_cast %36 : vector<1xf32> to vector<1x1x1xf32>
    %38 = vector.extract %37[0, 0, 0] : f32 from vector<1x1x1xf32>
    %39 = vector.broadcast %38 : f32 to vector<1x1xf32>
    %40 = arith.maximumf %34, %39 : vector<1x1xf32>
    %41 = arith.subf %34, %40 : vector<1x1xf32>
    %42 = math.exp %41 : vector<1x1xf32>
    %43 = vector.broadcast %40 : vector<1x1xf32> to vector<16x1xf32>
    %44 = arith.subf %33, %43 : vector<16x1xf32>
    %45 = math.exp %44 : vector<16x1xf32>
    %cst_15 = arith.constant 0.000000e+00 : f32
    %46 = vector.broadcast %cst_15 : f32 to vector<16x1xf32>
    %47 = arith.select %31, %45, %46 : vector<16x1xi1>, vector<16x1xf32>
    %c0_16 = arith.constant 0 : index
    %c0_17 = arith.constant 0 : index
    %48 = vector.load %arg11[%c0_16, %c0_17] : memref<1x1xf32, #tpu.memory_space<vmem>>, vector<1x1xf32>
    %49 = arith.mulf %42, %48 : vector<1x1xf32>
    %50 = vector.shape_cast %47 : vector<16x1xf32> to vector<1x16x1xf32>
    %cst_18 = arith.constant dense<0.000000e+00> : vector<1xf32>
    %51 = vector.multi_reduction <add>, %50, %cst_18 [1, 2] : vector<1x16x1xf32> to vector<1xf32>
    %52 = vector.shape_cast %51 : vector<1xf32> to vector<1x1x1xf32>
    %53 = vector.extract %52[0, 0, 0] : f32 from vector<1x1x1xf32>
    %54 = vector.broadcast %53 : f32 to vector<1x1xf32>
    %55 = arith.addf %49, %54 : vector<1x1xf32>
    %c0_19 = arith.constant 0 : index
    %c0_20 = arith.constant 0 : index
    %56 = vector.load %arg11[%c0_19, %c0_20] : memref<1x1xf32, #tpu.memory_space<vmem>>, vector<1x1xf32>
    tpu.vector_store %arg11[%c0_19, %c0_20], %55 {strides = array<i32>} : memref<1x1xf32, #tpu.memory_space<vmem>>, vector<1x1xf32>,
    %c0_21 = arith.constant 0 : index
    %c0_22 = arith.constant 0 : index
    %57 = vector.load %arg12[%c0_21, %c0_22] : memref<1x128xf32, #tpu.memory_space<vmem>>, vector<1x128xf32>
    %58 = vector.broadcast %42 : vector<1x1xf32> to vector<1x128xf32>
    %59 = arith.mulf %58, %57 : vector<1x128xf32>
    %60 = vector.broadcast %47 : vector<16x1xf32> to vector<16x128xf32>
    %61 = arith.mulf %4, %60 : vector<16x128xf32>
    %cst_23 = arith.constant dense<0.000000e+00> : vector<128xf32>
    %62 = vector.multi_reduction <add>, %61, %cst_23 [0] : vector<16x128xf32> to vector<128xf32>
    %63 = vector.shape_cast %62 : vector<128xf32> to vector<1x128xf32>
    %64 = arith.addf %59, %63 : vector<1x128xf32>
    %c0_24 = arith.constant 0 : index
    %c0_25 = arith.constant 0 : index
    %65 = vector.load %arg12[%c0_24, %c0_25] : memref<1x128xf32, #tpu.memory_space<vmem>>, vector<1x128xf32>
    tpu.vector_store %arg12[%c0_24, %c0_25], %64 {strides = array<i32>} : memref<1x128xf32, #tpu.memory_space<vmem>>, vector<1x128xf32>,
    %c0_26 = arith.constant 0 : index
    %c0_27 = arith.constant 0 : index
    %66 = vector.load %arg10[%c0_26, %c0_27] : memref<1x1xf32, #tpu.memory_space<vmem>>, vector<1x1xf32>
    tpu.vector_store %arg10[%c0_26, %c0_27], %40 {strides = array<i32>} : memref<1x1xf32, #tpu.memory_space<vmem>>, vector<1x1xf32>,
    %c1_i32 = arith.constant 1 : i32
    %67 = arith.cmpi eq, %arg1, %c1_i32 : i32
    %68 = arith.extui %67 : i1 to i32
    %c0_i32_28 = arith.constant 0 : i32
    %69 = arith.cmpi ne, %68, %c0_i32_28 : i32
    scf.if %69 {
      %c0_29 = arith.constant 0 : index
      %c0_30 = arith.constant 0 : index
      %70 = vector.load %arg10[%c0_29, %c0_30] : memref<1x1xf32, #tpu.memory_space<vmem>>, vector<1x1xf32>
      %71 = vector.shape_cast %70 : vector<1x1xf32> to vector<1x1xf32>
      %72 = vector.broadcast %71 : vector<1x1xf32> to vector<1x128xf32>
      %73 = vector.shape_cast %72 : vector<1x128xf32> to vector<1x1x128xf32>
      %c0_31 = arith.constant 0 : index
      %c0_32 = arith.constant 0 : index
      %c0_33 = arith.constant 0 : index
      %74 = vector.load %arg7[%c0_31, %c0_32, %c0_33] : memref<1x1x128xf32, #tpu.memory_space<vmem>>, vector<1x1x128xf32>
      tpu.vector_store %arg7[%c0_31, %c0_32, %c0_33], %73 {strides = array<i32>} : memref<1x1x128xf32, #tpu.memory_space<vmem>>, vector<1x1x128xf32>,
      %c0_34 = arith.constant 0 : index
      %c0_35 = arith.constant 0 : index
      %75 = vector.load %arg11[%c0_34, %c0_35] : memref<1x1xf32, #tpu.memory_space<vmem>>, vector<1x1xf32>
      %76 = vector.shape_cast %75 : vector<1x1xf32> to vector<1x1xf32>
      %77 = vector.broadcast %76 : vector<1x1xf32> to vector<1x128xf32>
      %78 = vector.shape_cast %77 : vector<1x128xf32> to vector<1x1x128xf32>
      %c0_36 = arith.constant 0 : index
      %c0_37 = arith.constant 0 : index
      %c0_38 = arith.constant 0 : index
      %79 = vector.load %arg8[%c0_36, %c0_37, %c0_38] : memref<1x1x128xf32, #tpu.memory_space<vmem>>, vector<1x1x128xf32>
      tpu.vector_store %arg8[%c0_36, %c0_37, %c0_38], %78 {strides = array<i32>} : memref<1x1x128xf32, #tpu.memory_space<vmem>>, vector<1x1x128xf32>,
      %c0_39 = arith.constant 0 : index
      %c0_40 = arith.constant 0 : index
      %80 = vector.load %arg12[%c0_39, %c0_40] : memref<1x128xf32, #tpu.memory_space<vmem>>, vector<1x128xf32>
      %81 = vector.shape_cast %80 : vector<1x128xf32> to vector<1x1x128xf32>
      %c0_41 = arith.constant 0 : index
      %c0_42 = arith.constant 0 : index
      %c0_43 = arith.constant 0 : index
      %82 = vector.load %arg9[%c0_41, %c0_42, %c0_43] : memref<1x1x128xf32, #tpu.memory_space<vmem>>, vector<1x1x128xf32>
      tpu.vector_store %arg9[%c0_41, %c0_42, %c0_43], %81 {strides = array<i32>} : memref<1x1x128xf32, #tpu.memory_space<vmem>>, vector<1x1x128xf32>,
    } else {
    }
    return
  }
  func.func @transform_0(%arg0: i32, %arg1: i32, %arg2: memref<1xi32, #tpu.memory_space<smem>>) -> (i32, i32) {
    %c2_i32 = arith.constant 2 : i32
    %0 = arith.muli %arg0, %c2_i32 : i32
    %1 = arith.addi %0, %arg1 : i32
    %c0_i32 = arith.constant 0 : i32
    %c0_i32_0 = arith.constant 0 : i32
    return %1, %c0_i32 : i32, i32
  }
  func.func @transform_1(%arg0: i32, %arg1: i32, %arg2: memref<1xi32, #tpu.memory_space<smem>>) -> (i32, i32) {
    %c0_i32 = arith.constant 0 : i32
    %c0_i32_0 = arith.constant 0 : i32
    %c0_i32_1 = arith.constant 0 : i32
    return %c0_i32, %c0_i32_0 : i32, i32
  }
  func.func @transform_2(%arg0: i32, %arg1: i32, %arg2: memref<1xi32, #tpu.memory_space<smem>>) -> (i32, i32) {
    %c0_i32 = arith.constant 0 : i32
    %c0_i32_0 = arith.constant 0 : i32
    %c0_i32_1 = arith.constant 0 : i32
    return %c0_i32, %c0_i32_0 : i32, i32
  }
  func.func @transform_3(%arg0: i32, %arg1: i32, %arg2: memref<1xi32, #tpu.memory_space<smem>>) -> (i32, i32) {
    %c0_i32 = arith.constant 0 : i32
    %c0_i32_0 = arith.constant 0 : i32
    %c0_i32_1 = arith.constant 0 : i32
    return %c0_i32, %c0_i32_0 : i32, i32
  }
  func.func @transform_4(%arg0: i32, %arg1: i32, %arg2: memref<1xi32, #tpu.memory_space<smem>>) -> (i32, i32, i32) {
    %c0_i32 = arith.constant 0 : i32
    %c0_i32_0 = arith.constant 0 : i32
    %c0_i32_1 = arith.constant 0 : i32
    return %arg0, %c0_i32, %c0_i32_0 : i32, i32, i32
  }
  func.func @transform_5(%arg0: i32, %arg1: i32, %arg2: memref<1xi32, #tpu.memory_space<smem>>) -> (i32, i32, i32) {
    %c0_i32 = arith.constant 0 : i32
    %c0_i32_0 = arith.constant 0 : i32
    %c0_i32_1 = arith.constant 0 : i32
    return %arg0, %c0_i32, %c0_i32_0 : i32, i32, i32
  }
  func.func @transform_6(%arg0: i32, %arg1: i32, %arg2: memref<1xi32, #tpu.memory_space<smem>>) -> (i32, i32, i32) {
    %c0_i32 = arith.constant 0 : i32
    %c0_i32_0 = arith.constant 0 : i32
    %c0_i32_1 = arith.constant 0 : i32
    return %arg0, %c0_i32, %c0_i32_0 : i32, i32, i32
  }
}

</mosaic_0001>

<llo_original>
// kernel: tpu_custom_call.1
$region0: #{tpu_custom_call.1}
  #allocation0 [shape = 'u32[]', space=smem, size = 0x4, offset = 0x4, fixed_abs, tag = 'smem constant byte address 0x4 - core index']
  #allocation1 [shape = 'u32[72,128]{1,0:T(1,128)}', space=vmem, size = 0x9000, scoped, tag = 'internal scratch']
  #allocation2 [shape = 'f32[1,1]{1,0:T(1,128)}', space=vmem, size = 0x200, scoped, tag = 'scratch operand']
  #allocation3 [shape = 'f32[1,1]{1,0:T(1,128)}', space=vmem, size = 0x200, scoped, tag = 'scratch operand']
  #allocation4 [shape = 'f32[1,128]{1,0:T(1,128)}', space=vmem, size = 0x200, scoped, tag = 'scratch operand']
  #allocation5 [shape = 's32[1]{0}', space=sflag, size = 0x4, scoped, tag = 'scoped memory for tpu_custom_call.1']
  #allocation6 [shape = 's32[1]{0:T(128)S(6)}', space=smem, size = 0x200, scoped, tag = 'prefetched SMEM operand 0']
  %s0 = inlined_call_operand.<no memory space> [shape: s32[1], index: 0, kind: input, shape index: {}]
  %s1 = inlined_call_operand.hbm [shape: f32[64,128], index: 1, kind: input, shape index: {}]
  %s2 = inlined_call_operand.hbm [shape: f32[128,256], index: 2, kind: input, shape index: {}]
  %s3 = inlined_call_operand.vmem [shape: f32[1,256], index: 3, kind: input, shape index: {}]
  %s4 = inlined_call_operand.vmem [shape: f32[1,128], index: 4, kind: input, shape index: {}]
  %s5 = inlined_call_operand.hbm [shape: f32[2,1,128], index: 5, kind: output, shape index: {0}]
  %s6 = inlined_call_operand.hbm [shape: f32[2,1,128], index: 6, kind: output, shape index: {1}]
  %s7 = inlined_call_operand.hbm [shape: f32[2,1,128], index: 7, kind: output, shape index: {2}]
  %8 = xla_tuple %s5, %s6, %s7
  %s9 = sld [smem:[#allocation0]]
  $region81: #{tpu_custom_call.1} parent=0
    _
  %s11 = ssub.s32 1, %s9
  %s12 = scalar_select 0, %s11, %s9
  %13 = sst [smem:[#allocation6]] %s0
  $region1: #{tpu_custom_call.1} parent=0
    #allocation7 [shape = 'u8[16384]{0}', space=vmem, size = 0x4000, scoped, tag = 'input window, operand 1']
    #allocation8 [shape = 's32[2]{0}', space=sflag, size = 0x8, scoped, tag = 'scoped memory for tpu_custom_call.1']
    #allocation9 [shape = 's32[2]{0}', space=sflag, size = 0x8, scoped, tag = 'scoped memory for tpu_custom_call.1']
    #allocation10 [shape = 'u8[131072]{0}', space=vmem, size = 0x20000, scoped, tag = 'input window, operand 2, single buffered']
    #allocation11 [shape = 's32[1]{0}', space=sflag, size = 0x4, scoped, tag = 'scoped memory for tpu_custom_call.1']
    #allocation12 [shape = 'u8[1024]{0}', space=vmem, size = 0x400, scoped, tag = 'output window, operand 0']
    #allocation13 [shape = 'u8[1024]{0}', space=vmem, size = 0x400, scoped, tag = 'output window, operand 1']
    #allocation14 [shape = 's32[2]{0}', space=sflag, size = 0x8, scoped, tag = 'scoped memory for tpu_custom_call.1']
    #allocation15 [shape = 'u8[1024]{0}', space=vmem, size = 0x400, scoped, tag = 'output window, operand 2']
    %14 = vsyncpa [#allocation8], 0
    %s15 = scalar_lea.sflag [#allocation8], 1
    %16 = vsyncpa %s15, 0
    %17 = vsyncpa [#allocation11], 0
    %18 = vsyncpa [#allocation9], 0
    %s19 = scalar_lea.sflag [#allocation9], 1
    %20 = vsyncpa %s19, 0
    %21 = vsyncpa [#allocation14], 0
    %s22 = scalar_lea.sflag [#allocation14], 1
    %23 = vsyncpa %s22, 0
    loop: start=0, step=1, limit=6
    $region2: #{tpu_custom_call.1} parent=1 // loop_pre_header
      _
    $region3: #{tpu_custom_call.1} parent=1 // loop_header
      %s25 = sphi 0, %s29
      %p26 = scmp.ge.s32.totalorder %s25, 6
      %s32 = sphi 0, %s44
      %s33 = sphi 0, %s40
      %s34 = sphi 0, %s32
      %s35 = sphi 0, %s33
      %s36 = sphi 0, %s34
      %s37 = sphi 0, %s35
      %s51 = sphi 0, %s53
      %s54 = sphi 0, %s51
      %s55 = sphi 0, %s54
      %s71 = sphi 0, %s55
      %s75 = sphi 0, %s75
      %s77 = sphi 0, %s75
      %s78 = sphi 0, %s77
      %s92 = sphi 0, %s78
      %s96 = sphi 0, %s96
      %s98 = sphi 0, %s96
      %s99 = sphi 0, %s98
      %s113 = sphi 0, %s99
      %s117 = sphi 0, %s117
      %s119 = sphi 0, %s117
      %s120 = sphi 0, %s119
      %s134 = sphi 0, %s120
      %s140 = sphi 0, %s142
      %s143 = sphi 0, %s140
      %s144 = sphi 0, %s143
      %s160 = sphi 0, %s144
      %s166 = sphi 0, %s168
      %s169 = sphi 0, %s166
      %s170 = sphi 0, %s169
      %s186 = sphi 0, %s170
      %s192 = sphi 0, %s194
      %s195 = sphi 0, %s192
      %s196 = sphi 0, %s195
      %s212 = sphi 0, %s196
    $region4: #{tpu_custom_call.1} parent=1 // loop_header_branch
      %28 = sbr.rel (%p26) target = $region8
    $region5: #{tpu_custom_call.1} parent=1 // loop_body
      %s30 = ssub.s32 %s25, 1
      %s31 = ssub.s32 %s25, 2
      %s38 = sadd.s32 1, %s33
      %p39 = scmp.ge.s32.totalorder %s38, 2
      %s40 = scalar_select %p39, 0, %s38
      %s41 = sadd.s32 1, %s32
      %s42 = scalar_select %p39, %s41, %s32
      %p43 = scmp.ge.s32.totalorder %s42, 2
      %s44 = scalar_select %p43, 0, %s42
      %s45 = smul.u32 %s32, 2
      %s46 = sadd.s32 %s45, %s33
      %s47 = smul.u32 %s44, 2
      %s48 = sadd.s32 %s47, %s40
      %s49 = ssub.s32 %s46, %s48
      %p50 = scmp.eq.s32.totalorder %s49, 0
      %s52 = sadd.s32 %s51, 1
      %s53 = scalar_select %p50, %s51, %s52
      %p56 = pneg %p50
      %p57 = scmp.eq.s32.totalorder %s25, 3
      %p58 = por %p56, %p57
      %p59 = scmp.ne.s32.totalorder %s51, %s54
      %p60 = scmp.eq.s32.totalorder %s25, 0
      %p61 = por %p59, %p60
      %p62 = scmp.ne.s32.totalorder %s51, %s54
      %p63 = scmp.eq.s32.totalorder %s30, 3
      %p64 = por %p62, %p63
      %p65 = scmp.ne.s32.totalorder %s54, %s55
      %p66 = scmp.eq.s32.totalorder %s30, 0
      %p67 = por %p65, %p66
      %p68 = scmp.ne.s32.totalorder %s54, %s55
      %p69 = scmp.eq.s32.totalorder %s31, 3
      %p70 = por %p68, %p69
      %p72 = scmp.ne.s32.totalorder %s55, %s71
      %p73 = scmp.eq.s32.totalorder %s31, 0
      %p74 = por %p72, %p73
      %s76 = sadd.s32 %s75, 1
      %p79 = scmp.eq.s32.totalorder %s25, 3
      %p80 = scmp.ne.s32.totalorder %s75, %s77
      %p81 = scmp.eq.s32.totalorder %s25, 0
      %p82 = por %p80, %p81
      %p83 = scmp.ne.s32.totalorder %s75, %s77
      %p84 = scmp.eq.s32.totalorder %s30, 3
      %p85 = por %p83, %p84
      %p86 = scmp.ne.s32.totalorder %s77, %s78
      %p87 = scmp.eq.s32.totalorder %s30, 0
      %p88 = por %p86, %p87
      %p89 = scmp.ne.s32.totalorder %s77, %s78
      %p90 = scmp.eq.s32.totalorder %s31, 3
      %p91 = por %p89, %p90
      %p93 = scmp.ne.s32.totalorder %s78, %s92
      %p94 = scmp.eq.s32.totalorder %s31, 0
      %p95 = por %p93, %p94
      %s97 = sadd.s32 %s96, 1
      %p100 = scmp.eq.s32.totalorder %s25, 3
      %p101 = scmp.ne.s32.totalorder %s96, %s98
      %p102 = scmp.eq.s32.totalorder %s25, 0
      %p103 = por %p101, %p102
      %p104 = scmp.ne.s32.totalorder %s96, %s98
      %p105 = scmp.eq.s32.totalorder %s30, 3
      %p106 = por %p104, %p105
      %p107 = scmp.ne.s32.totalorder %s98, %s99
      %p108 = scmp.eq.s32.totalorder %s30, 0
      %p109 = por %p107, %p108
      %p110 = scmp.ne.s32.totalorder %s98, %s99
      %p111 = scmp.eq.s32.totalorder %s31, 3
      %p112 = por %p110, %p111
      %p114 = scmp.ne.s32.totalorder %s99, %s113
      %p115 = scmp.eq.s32.totalorder %s31, 0
      %p116 = por %p114, %p115
      %s118 = sadd.s32 %s117, 1
      %p121 = scmp.eq.s32.totalorder %s25, 3
      %p122 = scmp.ne.s32.totalorder %s117, %s119
      %p123 = scmp.eq.s32.totalorder %s25, 0
      %p124 = por %p122, %p123
      %p125 = scmp.ne.s32.totalorder %s117, %s119
      %p126 = scmp.eq.s32.totalorder %s30, 3
      %p127 = por %p125, %p126
      %p128 = scmp.ne.s32.totalorder %s119, %s120
      %p129 = scmp.eq.s32.totalorder %s30, 0
      %p130 = por %p128, %p129
      %p131 = scmp.ne.s32.totalorder %s119, %s120
      %p132 = scmp.eq.s32.totalorder %s31, 3
      %p133 = por %p131, %p132
      %p135 = scmp.ne.s32.totalorder %s120, %s134
      %p136 = scmp.eq.s32.totalorder %s31, 0
      %p137 = por %p135, %p136
      %s138 = ssub.s32 %s32, %s44
      %p139 = scmp.eq.s32.totalorder %s138, 0
      %s141 = sadd.s32 %s140, 1
      %s142 = scalar_select %p139, %s140, %s141
      %p145 = pneg %p139
      %p146 = scmp.eq.s32.totalorder %s25, 3
      %p147 = por %p145, %p146
      %p148 = scmp.ne.s32.totalorder %s140, %s143
      %p149 = scmp.eq.s32.totalorder %s25, 0
      %p150 = por %p148, %p149
      %p151 = scmp.ne.s32.totalorder %s140, %s143
      %p152 = scmp.eq.s32.totalorder %s30, 3
      %p153 = por %p151, %p152
      %p154 = scmp.ne.s32.totalorder %s143, %s144
      %p155 = scmp.eq.s32.totalorder %s30, 0
      %p156 = por %p154, %p155
      %p157 = scmp.ne.s32.totalorder %s143, %s144
      %p158 = scmp.eq.s32.totalorder %s31, 3
      %p159 = por %p157, %p158
      %p161 = scmp.ne.s32.totalorder %s144, %s160
      %p162 = scmp.eq.s32.totalorder %s31, 0
      %p163 = por %p161, %p162
      %s164 = ssub.s32 %s32, %s44
      %p165 = scmp.eq.s32.totalorder %s164, 0
      %s167 = sadd.s32 %s166, 1
      %s168 = scalar_select %p165, %s166, %s167
      %p171 = pneg %p165
      %p172 = scmp.eq.s32.totalorder %s25, 3
      %p173 = por %p171, %p172
      %p174 = scmp.ne.s32.totalorder %s166, %s169
      %p175 = scmp.eq.s32.totalorder %s25, 0
      %p176 = por %p174, %p175
      %p177 = scmp.ne.s32.totalorder %s166, %s169
      %p178 = scmp.eq.s32.totalorder %s30, 3
      %p179 = por %p177, %p178
      %p180 = scmp.ne.s32.totalorder %s169, %s170
      %p181 = scmp.eq.s32.totalorder %s30, 0
      %p182 = por %p180, %p181
      %p183 = scmp.ne.s32.totalorder %s169, %s170
      %p184 = scmp.eq.s32.totalorder %s31, 3
      %p185 = por %p183, %p184
      %p187 = scmp.ne.s32.totalorder %s170, %s186
      %p188 = scmp.eq.s32.totalorder %s31, 0
      %p189 = por %p187, %p188
      %s190 = ssub.s32 %s32, %s44
      %p191 = scmp.eq.s32.totalorder %s190, 0
      %s193 = sadd.s32 %s192, 1
      %s194 = scalar_select %p191, %s192, %s193
      %p197 = pneg %p191
      %p198 = scmp.eq.s32.totalorder %s25, 3
      %p199 = por %p197, %p198
      %p200 = scmp.ne.s32.totalorder %s192, %s195
      %p201 = scmp.eq.s32.totalorder %s25, 0
      %p202 = por %p200, %p201
      %p203 = scmp.ne.s32.totalorder %s192, %s195
      %p204 = scmp.eq.s32.totalorder %s30, 3
      %p205 = por %p203, %p204
      %p206 = scmp.ne.s32.totalorder %s195, %s196
      %p207 = scmp.eq.s32.totalorder %s30, 0
      %p208 = por %p206, %p207
      %p209 = scmp.ne.s32.totalorder %s195, %s196
      %p210 = scmp.eq.s32.totalorder %s31, 3
      %p211 = por %p209, %p210
      %p213 = scmp.ne.s32.totalorder %s196, %s212
      %p214 = scmp.eq.s32.totalorder %s31, 0
      %p215 = por %p213, %p214
      %p216 = scmp.le.s32.totalorder 1, %s25
      %p217 = scmp.lt.s32.totalorder %s25, 5
      %p218 = pnand %p216, %p217
      %p219 = pneg %p218
      // Predicated region
      $region9: #{tpu_custom_call.1} parent=5 // pred_check
        _
      $region10: #{tpu_custom_call.1} parent=5 // pred_check_branch
        %221 = sbr.rel (%p218) target = $region12
      $region11: #{tpu_custom_call.1} parent=5 // pred_region
        %s222 = ssub.s32 %s25, 1
        // Predicated region
        $region13: #{tpu_custom_call.1} parent=11 // pred_check
          %p223 = pneg %p88
        $region14: #{tpu_custom_call.1} parent=11 // pred_check_branch
          %225 = sbr.rel (%p223) target = $region16
        $region15: #{tpu_custom_call.1} parent=11 // pred_region
          %227 = vsyncadd [#allocation11], 0
          %s228 = sshll.u32 %s2, 4
          %s229 = int_to_ptr.hbm [resolvable:$true] %s228
          %s230 = sshll.u32 [#allocation10], 4
          %s231 = int_to_ptr.vmem [resolvable:$true] %s230
          %236 = dma.hbm_to_vmem [thread:$0]  %s229, 4096, %s231, [#allocation11], 256, 256, 16
        $region16: #{tpu_custom_call.1} parent=11 // pred_fallthru
          _
        // Predicated region
        $region17: #{tpu_custom_call.1} parent=11 // pred_check
          %p237 = pneg %p109
        $region18: #{tpu_custom_call.1} parent=11 // pred_check_branch
          %239 = sbr.rel (%p237) target = $region20
        $region19: #{tpu_custom_call.1} parent=11 // pred_region
          _
        $region20: #{tpu_custom_call.1} parent=11 // pred_fallthru
          _
        // Predicated region
        $region21: #{tpu_custom_call.1} parent=11 // pred_check
          %p240 = pneg %p130
        $region22: #{tpu_custom_call.1} parent=11 // pred_check_branch
          %242 = sbr.rel (%p240) target = $region24
        $region23: #{tpu_custom_call.1} parent=11 // pred_region
          _
        $region24: #{tpu_custom_call.1} parent=11 // pred_fallthru
          _
      $region12: #{tpu_custom_call.1} parent=5 // pred_fallthru
        _
      %p243 = scmp.lt.s32.totalorder %s25, 4
      // Predicated region
      $region25: #{tpu_custom_call.1} parent=5 // pred_check
        %p244 = pneg %p243
      $region26: #{tpu_custom_call.1} parent=5 // pred_check_branch
        %246 = sbr.rel (%p244) target = $region28
      $region27: #{tpu_custom_call.1} parent=5 // pred_region
        // Predicated region
        $region29: #{tpu_custom_call.1} parent=27 // pred_check
          %p247 = pneg %p61
        $region30: #{tpu_custom_call.1} parent=27 // pred_check_branch
          %249 = sbr.rel (%p247) target = $region32
        $region31: #{tpu_custom_call.1} parent=27 // pred_region
          %s250 = sand.u32 %s51, 1
          %s251 = scalar_lea.sflag [#allocation8], %s250
          %s252 = sand.u32 %s51, 1
          %s253 = smul.addr %s252, 16
          %s254 = scalar_lea.vmem [#allocation7], %s253
          %s255 = smul.u32 %s32, 2
          %s256 = sadd.s32 %s255, %s33
          %s257 = smul.u32 2, %s256
          %259 = vsyncadd %s251, 0
          %s260 = smul.addr %s257, 8
          %s261 = scalar_lea.hbm %s1, %s260
          %s262 = sshll.u32 %s261, 4
          %s263 = int_to_ptr.hbm [resolvable:$true] %s262
          %s264 = sshll.u32 %s254, 4
          %s265 = int_to_ptr.vmem [resolvable:$true] %s264
          %270 = dma.hbm_to_vmem [thread:$0]  %s263, 256, %s265, %s251, 128, 128, 8
        $region32: #{tpu_custom_call.1} parent=27 // pred_fallthru
          _
      $region28: #{tpu_custom_call.1} parent=5 // pred_fallthru
        _
      %p271 = scmp.le.s32.totalorder 1, %s25
      %p272 = scmp.lt.s32.totalorder %s25, 5
      %p273 = pnand %p271, %p272
      %p274 = pneg %p273
      // Predicated region
      $region33: #{tpu_custom_call.1} parent=5 // pred_check
        _
      $region34: #{tpu_custom_call.1} parent=5 // pred_check_branch
        %276 = sbr.rel (%p273) target = $region36
      $region35: #{tpu_custom_call.1} parent=5 // pred_region
        %s277 = ssub.s32 %s25, 1
        %s278 = sand.u32 %s54, 1
        %s279 = scalar_lea.sflag [#allocation8], %s278
        %s280 = sand.u32 %s54, 1
        %s281 = smul.addr %s280, 16
        %s282 = scalar_lea.vmem [#allocation7], %s281
        // Predicated region
        $region37: #{tpu_custom_call.1} parent=35 // pred_check
          %p283 = pneg %p67
        $region38: #{tpu_custom_call.1} parent=35 // pred_check_branch
          %285 = sbr.rel (%p283) target = $region40
        $region39: #{tpu_custom_call.1} parent=35 // pred_region
          %287 = dma.done %s279, 256
        $region40: #{tpu_custom_call.1} parent=35 // pred_fallthru
          _
        // Predicated region
        $region41: #{tpu_custom_call.1} parent=35 // pred_check
          %p288 = pneg %p88
        $region42: #{tpu_custom_call.1} parent=35 // pred_check_branch
          %290 = sbr.rel (%p288) target = $region44
        $region43: #{tpu_custom_call.1} parent=35 // pred_region
          %292 = dma.done [#allocation11], 4096
        $region44: #{tpu_custom_call.1} parent=35 // pred_fallthru
          _
        %s293 = sand.u32 %s54, 1
        %s294 = scalar_lea.sflag [#allocation8], %s293
        %s295 = sand.u32 %s54, 1
        %s296 = smul.addr %s295, 16
        %s297 = scalar_lea.vmem [#allocation7], %s296
        %p298 = pneg %p67
        %p299 = pneg %p64
        %p300 = pneg %p88
        %p301 = pneg %p85
        %p302 = pneg %p109
        %p303 = pneg %p106
        %p304 = pneg %p130
        %p305 = pneg %p127
        %p306 = pneg %p156
        %p307 = pneg %p153
        %s308 = sand.u32 %s143, 1
        %s309 = scalar_lea.sflag [#allocation9], %s308
        %s310 = sand.u32 %s143, 1
        %s311 = scalar_lea.vmem [#allocation12], %s310
        %p312 = pneg %p182
        %p313 = pneg %p179
        %s314 = sand.u32 %s30, 1
        %s315 = scalar_lea.sflag [#allocation14], %s314
        %s316 = sand.u32 %s169, 1
        %s317 = scalar_lea.vmem [#allocation13], %s316
        %p318 = pneg %p208
        %p319 = pneg %p205
        %s320 = sand.u32 %s30, 1
        %s321 = scalar_lea.sflag [#allocation14], %s320
        %s322 = sand.u32 %s195, 1
        %s323 = scalar_lea.vmem [#allocation15], %s322
        %s324 = smul.u32 %s34, 2
        %s325 = sadd.s32 %s324, %s35
        %s326 = smul.u32 2, %s325
        %s327 = sld [smem:[#allocation6]]
        %p328 = scmp.eq.s32.totalorder %s35, 0
        // Predicated region
        $region45: #{tpu_custom_call.1} parent=35 // pred_check
          %p329 = pneg %p328
        $region46: #{tpu_custom_call.1} parent=35 // pred_check_branch
          %331 = sbr.rel (%p329) target = $region48
        $region47: #{tpu_custom_call.1} parent=35 // pred_region
          %vm332 = vcmask 0
          %333 = vst.msk [vmem:[#allocation2] sm:$0x1] %vm332, -1e+30
          %334 = vst.msk [vmem:[#allocation3] sm:$0x1] %vm332, 0.0
          %335 = vst [vmem:[#allocation4] sm:$0x1] 0.0
        $region48: #{tpu_custom_call.1} parent=35 // pred_fallthru
          _
        %v336 = vld [vmem:[%s282] sm:$0xff]
        %v337 = vld [vmem:[%s282 + $0x8] sm:$0xff]
        %v338 = vld [vmem:[#allocation10] sm:$0xff]
        %v339 = vld [vmem:[#allocation10 + $0x8] sm:$0xff]
        %v340 = vld [vmem:[#allocation10 + $0x10] sm:$0xff]
        %v341 = vld [vmem:[#allocation10 + $0x18] sm:$0xff]
        %v342 = vld [vmem:[#allocation10 + $0x20] sm:$0xff]
        %v343 = vld [vmem:[#allocation10 + $0x28] sm:$0xff]
        %v344 = vld [vmem:[#allocation10 + $0x30] sm:$0xff]
        %v345 = vld [vmem:[#allocation10 + $0x38] sm:$0xff]
        %v346 = vld [vmem:[#allocation10 + $0x40] sm:$0xff]
        %v347 = vld [vmem:[#allocation10 + $0x48] sm:$0xff]
        %v348 = vld [vmem:[#allocation10 + $0x50] sm:$0xff]
        %v349 = vld [vmem:[#allocation10 + $0x58] sm:$0xff]
        %v350 = vld [vmem:[#allocation10 + $0x60] sm:$0xff]
        %v351 = vld [vmem:[#allocation10 + $0x68] sm:$0xff]
        %v352 = vld [vmem:[#allocation10 + $0x70] sm:$0xff]
        %v353 = vld [vmem:[#allocation10 + $0x78] sm:$0xff]
        %v354 = vld [vmem:[#allocation10 + $0x80] sm:$0xff]
        %v355 = vld [vmem:[#allocation10 + $0x88] sm:$0xff]
        %v356 = vld [vmem:[#allocation10 + $0x90] sm:$0xff]
        %v357 = vld [vmem:[#allocation10 + $0x98] sm:$0xff]
        %v358 = vld [vmem:[#allocation10 + $0xa0] sm:$0xff]
        %v359 = vld [vmem:[#allocation10 + $0xa8] sm:$0xff]
        %v360 = vld [vmem:[#allocation10 + $0xb0] sm:$0xff]
        %v361 = vld [vmem:[#allocation10 + $0xb8] sm:$0xff]
        %v362 = vld [vmem:[#allocation10 + $0xc0] sm:$0xff]
        %v363 = vld [vmem:[#allocation10 + $0xc8] sm:$0xff]
        %v364 = vld [vmem:[#allocation10 + $0xd0] sm:$0xff]
        %v365 = vld [vmem:[#allocation10 + $0xd8] sm:$0xff]
        %v366 = vld [vmem:[#allocation10 + $0xe0] sm:$0xff]
        %v367 = vld [vmem:[#allocation10 + $0xe8] sm:$0xff]
        %v368 = vld [vmem:[#allocation10 + $0xf0] sm:$0xff]
        %v369 = vld [vmem:[#allocation10 + $0xf8] sm:$0xff]
        %v370 = vld [vmem:[%s3] sm:$0x3]
        %v372 = vperm.slane %v370, 0
        %v373 = vperm.slane %v370, 1
        %376 = vmatpush.msra.mxu0 %v368
        %377 = vmatpush.msra.mxu0 %v366
        %378 = vmatpush.msra.mxu0 %v364
        %379 = vmatpush.msra.mxu0 %v362
        %380 = vmatpush.msra.mxu0 %v360
        %381 = vmatpush.msra.mxu0 %v358
        %382 = vmatpush.msra.mxu0 %v356
        %383 = vmatpush.msra.mxu0 %v354
        %384 = vmatpush.msra.mxu0 %v352
        %385 = vmatpush.msra.mxu0 %v350
        %386 = vmatpush.msra.mxu0 %v348
        %387 = vmatpush.msra.mxu0 %v346
        %388 = vmatpush.msra.mxu0 %v344
        %389 = vmatpush.msra.mxu0 %v342
        %390 = vmatpush.msra.mxu0 %v340
        %391 = vmatpush.msra.mxu0 %v338
        %392 = vmatmul.f32.gmra.mxu0 %v336
        %v393 = vpop.f32.mrf.mxu0
        %v394 = vadd.f32 %v372, %v393
        %395 = vmatmul.f32.gmra.mxu0 %v337
        %v396 = vpop.f32.mrf.mxu0
        %v397 = vadd.f32 %v372, %v396
        %398 = vdwg.mxu0
        %399 = vmatpush.msra.mxu0 %v369
        %400 = vmatpush.msra.mxu0 %v367
        %401 = vmatpush.msra.mxu0 %v365
        %402 = vmatpush.msra.mxu0 %v363
        %403 = vmatpush.msra.mxu0 %v361
        %404 = vmatpush.msra.mxu0 %v359
        %405 = vmatpush.msra.mxu0 %v357
        %406 = vmatpush.msra.mxu0 %v355
        %407 = vmatpush.msra.mxu0 %v353
        %408 = vmatpush.msra.mxu0 %v351
        %409 = vmatpush.msra.mxu0 %v349
        %410 = vmatpush.msra.mxu0 %v347
        %411 = vmatpush.msra.mxu0 %v345
        %412 = vmatpush.msra.mxu0 %v343
        %413 = vmatpush.msra.mxu0 %v341
        %414 = vmatpush.msra.mxu0 %v339
        %415 = vmatmul.f32.gmra.mxu0 %v336
        %v416 = vpop.f32.mrf.mxu0
        %v417 = vadd.f32 %v373, %v416
        %418 = vmatmul.f32.gmra.mxu0 %v337
        %v419 = vpop.f32.mrf.mxu0
        %v420 = vadd.f32 %v373, %v419
        %421 = vdwg.mxu0
        %v422 = vtanh.pop %v394
        %v423 = vtanh.pop %v397
        %v424 = vxor.u32 %v417, 2147483648
        %v425 = vxor.u32 %v420, 2147483648
        %v426 = vmul.f32 %v424, 1.442695
        %v427 = vpow.pop %v426
        %v428 = vmul.f32 %v425, 1.442695
        %v429 = vpow.pop %v428
        %v430 = vadd.f32 %v427, 1.0
        %v431 = vadd.f32 %v429, 1.0
        %v432 = vrcp.pop %v430
        %v433 = vmul.f32 %v430, %v432
        %v434 = vsub.f32 1.0, %v433
        %v435 = vmul.f32 %v432, %v434
        %v436 = vadd.f32 %v432, %v435
        %vm437 = vweird.f32 %v430
        %vm438 = vweird.f32 %v432
        %vm439 = vmor %vm437, %vm438
        %v440 = vsel %vm439, %v432, %v436
        %v441 = vand.u32 2147483647, %v430
        %vm442 = vcmp.eq.f32.partialorder %v441, 8.507059e+37
        %v443 = vand.u32 %v430, 2147483648
        %v444 = vor.u32 1.1754944e-38, %v443
        %v445 = vsel %vm442, %v444, %v440
        %v446 = vmul.f32 1.0, %v445
        %v447 = vrcp.pop %v431
        %v448 = vmul.f32 %v431, %v447
        %v449 = vsub.f32 1.0, %v448
        %v450 = vmul.f32 %v447, %v449
        %v451 = vadd.f32 %v447, %v450
        %vm452 = vweird.f32 %v431
        %vm453 = vweird.f32 %v447
        %vm454 = vmor %vm452, %vm453
        %v455 = vsel %vm454, %v447, %v451
        %v456 = vand.u32 2147483647, %v431
        %vm457 = vcmp.eq.f32.partialorder %v456, 8.507059e+37
        %v458 = vand.u32 %v431, 2147483648
        %v459 = vor.u32 1.1754944e-38, %v458
        %v460 = vsel %vm457, %v459, %v455
        %v461 = vmul.f32 1.0, %v460
        %v462 = vmul.f32 %v422, %v446
        %v463 = vmul.f32 %v423, %v461
        %v464 = vld [vmem:[%s4] sm:$0x1]
        %v466 = vperm.slane %v464, 0
        %v468 = vmul.f32 %v462, %v466
        %v469 = vmul.f32 %v463, %v466
        %470 = vadd.xlane.f32.xlu0 %v468
        %v471 = vpop.xlane.xlu0 %470
        %472 = vadd.xlane.f32.xlu0 %v469
        %v473 = vpop.xlane.xlu0 %472
        %v474 = vlaneseq
        %v475 = vshrl.u32 %v474, 7
        %v476 = vadd.s32 %v475, 8
        %s477 = smul.u32 %s34, 2
        %s478 = sadd.s32 %s477, %s35
        %s479 = smul.u32 %s478, 16
        %v480 = vstv %s479
        %v481 = vadd.s32 %v475, %v480
        %v482 = vadd.s32 %v476, %v480
        %v483 = vstv %s327
        %vm484 = vcmp.lt.s32.totalorder %v481, %v483
        %vm485 = vcmp.lt.s32.totalorder %v482, %v483
        %v486 = vsel %vm484, %v471, -1e+30
        %v487 = vsel %vm485, %v473, -1e+30
        %v488 = vld [vmem:[#allocation2] sm:$0x1]
        %v489 = vmax.f32 %v486, %v487
        %v490 = vrot.slane %v489, 4
        %v491 = vmax.f32 %v489, %v490
        %v492 = vrot.slane %v491, 2
        %v493 = vmax.f32 %v491, %v492
        %v494 = vrot.slane %v493, 1
        %v495 = vmax.f32 %v493, %v494
        %s496 = vtos %v495
        %v497 = vstv %s496
        %v498 = vmax.f32 %v488, %v497
        %v499 = vsub.f32 %v488, %v498
        %v500 = vmul.f32 %v499, 1.442695
        %v501 = vpow.pop %v500
        %v503 = vperm.slane %v498, 0
        %v505 = vsub.f32 %v486, %v503
        %v506 = vsub.f32 %v487, %v503
        %v507 = vmul.f32 %v505, 1.442695
        %v508 = vpow.pop %v507
        %v509 = vmul.f32 %v506, 1.442695
        %v510 = vpow.pop %v509
        %v511 = vsel %vm484, %v508, 0.0
        %v512 = vsel %vm485, %v510, 0.0
        %v513 = vld [vmem:[#allocation3] sm:$0x1]
        %v514 = vmul.f32 %v501, %v513
        %vm515 = vcmask 7168
        %v516 = vsel %vm515, %v511, 0.0
        %v517 = vsel %vm515, %v512, 0.0
        %v518 = vadd.f32 %v516, %v517
        %519 = vadd.xlane.f32.xlu0 %v518
        %v520 = vpop.xlane.xlu0 %519
        %v521 = vrot.slane %v520, 4
        %v522 = vadd.f32 %v520, %v521
        %v523 = vrot.slane %v522, 2
        %v524 = vadd.f32 %v522, %v523
        %v525 = vrot.slane %v524, 1
        %v526 = vadd.f32 %v524, %v525
        %s527 = vtos %v526
        %v528 = vstv %s527
        %v529 = vadd.f32 %v514, %v528
        %vm530 = vcmask 0
        %531 = vst.msk [vmem:[#allocation3] sm:$0x1] %vm530, %v529
        %v532 = vld [vmem:[#allocation4] sm:$0x1]
        %534 = vset.pattern.permute.xlu0 0
        %535 = vperm.xlu0 %534, %v501
        %v536 = vpop.permute.xlu0 %535
        %v538 = vperm.slane %v536, 0
        %v539 = vmul.f32 %v538, %v532
        %541 = vset.pattern.permute.xlu0 0
        %542 = vperm.xlu0 %541, %v511
        %v543 = vpop.permute.xlu0 %542
        %546 = vset.pattern.permute.xlu0 0
        %547 = vperm.xlu0 %546, %v512
        %v548 = vpop.permute.xlu0 %547
        %v550 = vmul.f32 %v336, %v543
        %v551 = vmul.f32 %v337, %v548
        %v552 = vadd.f32 %v550, %v551
        %v553 = vrot.slane %v552, 4
        %v554 = vadd.f32 %v552, %v553
        %v555 = vrot.slane %v554, 2
        %v556 = vadd.f32 %v554, %v555
        %v557 = vrot.slane %v556, 1
        %v558 = vadd.f32 %v556, %v557
        %v559 = vadd.f32 %v539, %v558
        %560 = vst [vmem:[#allocation4] sm:$0x1] %v559
        %561 = vst.msk [vmem:[#allocation2] sm:$0x1] %vm530, %v498
        %p562 = scmp.eq.s32.totalorder %s35, 1
        // Predicated region
        $region49: #{tpu_custom_call.1} parent=35 // pred_check
          %p563 = pneg %p562
        $region50: #{tpu_custom_call.1} parent=35 // pred_check_branch
          %565 = sbr.rel (%p563) target = $region52
        $region51: #{tpu_custom_call.1} parent=35 // pred_region
          %v566 = vld [vmem:[#allocation2] sm:$0x1]
          %568 = vset.pattern.permute.xlu0 0
          %569 = vperm.xlu0 %568, %v566
          %v570 = vpop.permute.xlu0 %569
          %v572 = vperm.slane %v570, 0
          %573 = vst [vmem:[%s311] sm:$0x1] %v572
          %v574 = vld [vmem:[#allocation3] sm:$0x1]
          %576 = vset.pattern.permute.xlu0 0
          %577 = vperm.xlu0 %576, %v574
          %v578 = vpop.permute.xlu0 %577
          %v580 = vperm.slane %v578, 0
          %581 = vst [vmem:[%s317] sm:$0x1] %v580
          %v582 = vld [vmem:[#allocation4] sm:$0x1]
          %583 = vst [vmem:[%s323] sm:$0x1] %v582
        $region52: #{tpu_custom_call.1} parent=35 // pred_fallthru
          _
        %s584 = sand.u32 %s143, 1
        %s585 = scalar_lea.sflag [#allocation9], %s584
        %s586 = sand.u32 %s143, 1
        %s587 = scalar_lea.vmem [#allocation12], %s586
        %s588 = sand.u32 %s30, 1
        %s589 = scalar_lea.sflag [#allocation14], %s588
        %s590 = sand.u32 %s169, 1
        %s591 = scalar_lea.vmem [#allocation13], %s590
        %s592 = sand.u32 %s30, 1
        %s593 = scalar_lea.sflag [#allocation14], %s592
        %s594 = sand.u32 %s195, 1
        %s595 = scalar_lea.vmem [#allocation15], %s594
        // Predicated region
        $region53: #{tpu_custom_call.1} parent=35 // pred_check
          %p596 = pneg %p153
        $region54: #{tpu_custom_call.1} parent=35 // pred_check_branch
          %598 = sbr.rel (%p596) target = $region56
        $region55: #{tpu_custom_call.1} parent=35 // pred_region
          %600 = vsyncadd %s585, 0
          %s601 = scalar_lea.hbm %s5, %s34
          %s603 = sshll.u32 %s587, 4
          %s604 = int_to_ptr.vmem [resolvable:$true] %s603
          %s605 = sshll.u32 %s601, 4
          %s606 = int_to_ptr.hbm [resolvable:$true] %s605
          %608 = dma.vmem_to_hbm [thread:$0]  %s604, 16, %s606, %s585
        $region56: #{tpu_custom_call.1} parent=35 // pred_fallthru
          _
        // Predicated region
        $region57: #{tpu_custom_call.1} parent=35 // pred_check
          %p609 = pneg %p179
        $region58: #{tpu_custom_call.1} parent=35 // pred_check_branch
          %611 = sbr.rel (%p609) target = $region60
        $region59: #{tpu_custom_call.1} parent=35 // pred_region
          %613 = vsyncadd %s589, 0
          %s614 = scalar_lea.hbm %s6, %s34
          %s616 = sshll.u32 %s591, 4
          %s617 = int_to_ptr.vmem [resolvable:$true] %s616
          %s618 = sshll.u32 %s614, 4
          %s619 = int_to_ptr.hbm [resolvable:$true] %s618
          %621 = dma.vmem_to_hbm [thread:$0]  %s617, 16, %s619, %s589
        $region60: #{tpu_custom_call.1} parent=35 // pred_fallthru
          _
        // Predicated region
        $region61: #{tpu_custom_call.1} parent=35 // pred_check
          %p622 = pneg %p205
        $region62: #{tpu_custom_call.1} parent=35 // pred_check_branch
          %624 = sbr.rel (%p622) target = $region64
        $region63: #{tpu_custom_call.1} parent=35 // pred_region
          %626 = vsyncadd %s593, 0
          %s627 = scalar_lea.hbm %s7, %s34
          %s629 = sshll.u32 %s595, 4
          %s630 = int_to_ptr.vmem [resolvable:$true] %s629
          %s631 = sshll.u32 %s627, 4
          %s632 = int_to_ptr.hbm [resolvable:$true] %s631
          %634 = dma.vmem_to_hbm [thread:$0]  %s630, 16, %s632, %s593
        $region64: #{tpu_custom_call.1} parent=35 // pred_fallthru
          _
      $region36: #{tpu_custom_call.1} parent=5 // pred_fallthru
        _
      %p635 = scmp.le.s32.totalorder 2, %s25
      // Predicated region
      $region65: #{tpu_custom_call.1} parent=5 // pred_check
        %p636 = pneg %p635
      $region66: #{tpu_custom_call.1} parent=5 // pred_check_branch
        %638 = sbr.rel (%p636) target = $region68
      $region67: #{tpu_custom_call.1} parent=5 // pred_region
        %s639 = ssub.s32 %s25, 2
        // Predicated region
        $region69: #{tpu_custom_call.1} parent=67 // pred_check
          %p640 = pneg %p159
        $region70: #{tpu_custom_call.1} parent=67 // pred_check_branch
          %642 = sbr.rel (%p640) target = $region72
        $region71: #{tpu_custom_call.1} parent=67 // pred_region
          %s643 = sand.u32 %s144, 1
          %s644 = scalar_lea.sflag [#allocation9], %s643
          %s645 = sand.u32 %s144, 1
          %s646 = scalar_lea.vmem [#allocation12], %s645
          %648 = dma.done %s644, 16
        $region72: #{tpu_custom_call.1} parent=67 // pred_fallthru
          _
        // Predicated region
        $region73: #{tpu_custom_call.1} parent=67 // pred_check
          %p649 = pneg %p185
        $region74: #{tpu_custom_call.1} parent=67 // pred_check_branch
          %651 = sbr.rel (%p649) target = $region76
        $region75: #{tpu_custom_call.1} parent=67 // pred_region
          %s652 = sand.u32 %s31, 1
          %s653 = scalar_lea.sflag [#allocation14], %s652
          %s654 = sand.u32 %s170, 1
          %s655 = scalar_lea.vmem [#allocation13], %s654
          %657 = dma.done %s653, 16
        $region76: #{tpu_custom_call.1} parent=67 // pred_fallthru
          _
        // Predicated region
        $region77: #{tpu_custom_call.1} parent=67 // pred_check
          %p658 = pneg %p211
        $region78: #{tpu_custom_call.1} parent=67 // pred_check_branch
          %660 = sbr.rel (%p658) target = $region80
        $region79: #{tpu_custom_call.1} parent=67 // pred_region
          %s661 = sand.u32 %s31, 1
          %s662 = scalar_lea.sflag [#allocation14], %s661
          %s663 = sand.u32 %s196, 1
          %s664 = scalar_lea.vmem [#allocation15], %s663
          %666 = dma.done %s662, 16
        $region80: #{tpu_custom_call.1} parent=67 // pred_fallthru
          _
      $region68: #{tpu_custom_call.1} parent=5 // pred_fallthru
        _
    $region6: #{tpu_custom_call.1} parent=1 // loop_footer
      %s29 = sadd.s32 1, %s25
    $region7: #{tpu_custom_call.1} parent=1 // loop_footer_branch
      %24 = sbr.rel target = $region3
    $region8: #{tpu_custom_call.1} parent=1 // loop_exit
      _
    %667 = vsyncpa [#allocation8], 1
    %s668 = scalar_lea.sflag [#allocation8], 1
    %669 = vsyncpa %s668, 1
    %670 = vsyncpa [#allocation11], 1
    %671 = vsyncpa [#allocation9], 1
    %s672 = scalar_lea.sflag [#allocation9], 1
    %673 = vsyncpa %s672, 1
    %674 = vsyncpa [#allocation14], 1
    %s675 = scalar_lea.sflag [#allocation14], 1
    %676 = vsyncpa %s675, 1

</llo_original>
